<compile_context>
chip_gen: v5e
topology: v5e:2x2
jax: 0.10.0
libtpu: 0.0.40
codegen_flags: <defaults>
</compile_context>

<pallas_src>
import jax
import jax.numpy as jnp
from jax.experimental import pallas as pl
from jax.experimental.pallas import tpu as pltpu

H_PAD = 256     # packing height for layers 2-5 weights (>= widest K = 256)
OUT_PAD = 128   # lane-dense padded width of layers 2-5 outputs (>= action_size)


def _round_up(x, m):
    return ((x + m - 1) // m) * m


def _cdiv(a, b):
    return (a + b - 1) // b


def _make_kernel(n_layers, d1_pad):
    """Whole forward pass on one batch tile, fully resident in VMEM."""

    def kernel(x_ref, w1_ref, wr_ref, b_ref, o_ref):
        w_dtype = w1_ref.dtype  # bf16 (default) or f32
        # Layer 1: (tb, S) @ (S, d1_pad) -> f32 accumulate on the MXU.
        h = jnp.dot(x_ref[...].astype(w_dtype), w1_ref[...],
                    preferred_element_type=jnp.float32)
        # Bias + ReLU in f32 on the VPU; bf16 carry fused into the activation.
        h = jnp.maximum(h + b_ref[0, :, :d1_pad], 0.0).astype(w_dtype)

        # Layer 2: (tb, d1_pad) @ (d1_pad, 128) -> (tb, 128).
        h = jnp.dot(h, wr_ref[0, :d1_pad, :], preferred_element_type=jnp.float32)

        # Layers 3..n: (tb, 128) @ (128, 128), static slices of the packed
        # weights (padded-to-128 math is exact: zero weights/bias -> relu(0)=0).
        for i in range(2, n_layers):
            h = jnp.maximum(h + b_ref[i - 1, :, :OUT_PAD], 0.0).astype(w_dtype)
            h = jnp.dot(h, wr_ref[i - 1, :OUT_PAD, :],
                        preferred_element_type=jnp.float32)

        # Head bias + ReLU (the reference module applies ReLU on the head too),
        # then lane-dense 128-wide unmasked store (bf16 by default).
        h = jnp.maximum(h + b_ref[n_layers - 1, :, :OUT_PAD], 0.0)
        o_ref[...] = h.astype(o_ref.dtype)

    return kernel


def pack_params(params, use_bf16=True):
    """Pack 5 (W_(in,out), b_(1,out)) pairs for the fused kernel.

    Returns:
      w1     : (state_size, d1_pad)          layer-1 weight (cols zero-padded)
      wr_all : (n_layers-1, H_PAD, OUT_PAD)  layers 2..n, zero-padded
      b_all  : (n_layers, 1, H_PAD)          all biases, zero-padded, f32
    """
    n_layers = len(params)
    w_dtype = jnp.bfloat16 if use_bf16 else jnp.float32

    w1, b1 = params[0]
    d_in, d1 = w1.shape
    d1_pad = _round_up(d1, 128)
    assert d1_pad <= H_PAD, f"layer-1 output width {d1} exceeds packing pad {H_PAD}"
    for idx, (w, b) in enumerate(params[1:], start=1):
        k_cap = d1_pad if idx == 1 else OUT_PAD
        assert w.shape[0] <= k_cap, f"layer {idx+1} fan_in {w.shape[0]} > {k_cap}"
        assert w.shape[1] <= OUT_PAD, f"layer {idx+1} fan_out {w.shape[1]} > {OUT_PAD}"
        assert b.reshape(-1).shape[0] == w.shape[1]

    w1_p = jnp.zeros((d_in, d1_pad), w_dtype).at[:, :d1].set(w1.astype(w_dtype))
    wr_all = jnp.zeros((n_layers - 1, H_PAD, OUT_PAD), w_dtype)
    b_all = jnp.zeros((n_layers, 1, H_PAD), jnp.float32)
    b_all = b_all.at[0, 0, :d1].set(b1.reshape(-1))
    for idx, (w, b) in enumerate(params[1:], start=1):
        wr_all = wr_all.at[idx - 1, :w.shape[0], :w.shape[1]].set(w.astype(w_dtype))
        b_all = b_all.at[idx, 0, :b.shape[-1]].set(b.reshape(-1))
    return w1_p, wr_all, b_all


def dqn_relu_forward(x, w1, wr_all, b_all, action_size, *, tb=None):
    """x: (batch, state_size) f32. Packed params from pack_params()."""
    batch, state_size = x.shape
    n_layers = b_all.shape[0]
    d1_pad = w1.shape[1]
    assert w1.shape[0] == state_size
    assert wr_all.shape == (n_layers - 1, H_PAD, OUT_PAD)
    assert b_all.shape == (n_layers, 1, H_PAD)
    assert action_size <= OUT_PAD, "action_size must fit the 128-lane output pad"
    assert d1_pad <= H_PAD

    # Batch tile: multiple of 8 sublanes.  For batch > 64 force >= 2 grid steps
    # so the "parallel" axis can shard across v7x's two TensorCores; cap at
    # 2048 rows (VMEM use stays ~1 MiB, far below every chip's limit).
    if tb is None:
        batch8 = _round_up(batch, 8)
        if batch8 <= 64:
            tb = batch8                       # tiny batch: one step
        else:
            tb = min(2048, _round_up(_cdiv(batch8, 2), 8))
    tb = _round_up(tb, 8)
    batch_p = _round_up(batch, tb)
    if batch_p != batch:
        x = jnp.pad(x, ((0, batch_p - batch), (0, 0)))

    grid = (batch_p // tb,)
    kernel = _make_kernel(n_layers, d1_pad)
    out_dtype = w1.dtype  # bf16 by default: halves the output HBM writeback

    # True (trimmed) per-row work.
    per_row_flops = 2 * (state_size * d1_pad + d1_pad * OUT_PAD
                         + (n_layers - 2) * OUT_PAD * OUT_PAD)
    flops = batch_p * per_row_flops
    bytes_accessed = (x.size * x.dtype.itemsize
                      + w1.size * w1.dtype.itemsize
                      + wr_all.size * wr_all.dtype.itemsize
                      + b_all.size * b_all.dtype.itemsize
                      + batch_p * OUT_PAD * jnp.dtype(out_dtype).itemsize)

    out = pl.pallas_call(
        kernel,
        out_shape=jax.ShapeDtypeStruct((batch_p, OUT_PAD), out_dtype),
        grid=grid,
        in_specs=[
            # batch-tiled input: pipelined / double-buffered behind compute
            pl.BlockSpec((tb, state_size), lambda i: (i, 0)),
            # packed weights + biases: constant index maps -> DMA'd once and
            # VMEM-resident across all grid steps
            pl.BlockSpec((state_size, d1_pad), lambda i: (0, 0)),
            pl.BlockSpec((n_layers - 1, H_PAD, OUT_PAD), lambda i: (0, 0, 0)),
            pl.BlockSpec((n_layers, 1, H_PAD), lambda i: (0, 0, 0)),
        ],
        out_specs=pl.BlockSpec((tb, OUT_PAD), lambda i: (i, 0)),
        compiler_params=pltpu.CompilerParams(
            dimension_semantics=("parallel",)),  # shard batch tiles over TCs
        cost_estimate=pl.CostEstimate(
            flops=flops, transcendentals=0, bytes_accessed=bytes_accessed),
    )(x, w1, wr_all, b_all)

    return out[:batch, :action_size].astype(jnp.float32)


def init_params(state_size, action_size, key):
    """Deterministic init mirroring nn.Linear shapes (uniform +/-1/sqrt(fan_in)),
    stored pre-transposed as (in, out)."""
    dims = [state_size, 256, 128, 64, 32, action_size]
    params = []
    for i in range(len(dims) - 1):
        fan_in, fan_out = dims[i], dims[i + 1]
        key, kw, kb = jax.random.split(key, 3)
        bound = 1.0 / jnp.sqrt(jnp.float32(fan_in))
        w = jax.random.uniform(kw, (fan_in, fan_out), jnp.float32, -bound, bound)
        b = jax.random.uniform(kb, (1, fan_out), jnp.float32, -bound, bound)
        params.append((w, b))
    return params


def reference_forward(x, params):
    # Matches the PyTorch module: ReLU after every layer, including the head.
    h = x
    for w, b in params:
        h = jnp.maximum(h @ w + b, 0.0)
    return h


if __name__ == "__main__":
    state_size, action_size = 8, 4

    key = jax.random.PRNGKey(0)
    params_key, key = jax.random.split(key)
    params = init_params(state_size, action_size, params_key)
    w1_p, wr_all, b_all = pack_params(params, use_bf16=True)

    # Tiny batch (original demo shape): single grid step.
    key, kx = jax.random.split(key)
    x_small = jax.random.normal(kx, (2, state_size), jnp.float32)
    out_small = jax.block_until_ready(
        dqn_relu_forward(x_small, w1_p, wr_all, b_all, action_size))
    ref_small = reference_forward(x_small, params)
    assert out_small.shape == (2, action_size)
    # bf16 weights / activations / output vs f32 reference -> loosened tolerance.
    # (Set use_bf16=False in pack_params for near-f32 parity.)
    assert jnp.allclose(out_small, ref_small, atol=5e-2, rtol=5e-2)

    # Larger, non-multiple-of-tile batch: exercises batch padding, the >=2-step
    # tile heuristic (megacore-parallel batch axis) and VMEM-resident weights.
    key, kx = jax.random.split(key)
    x_big = jax.random.normal(kx, (300, state_size), jnp.float32)
    out_big = jax.block_until_ready(
        dqn_relu_forward(x_big, w1_p, wr_all, b_all, action_size))
    ref_big = reference_forward(x_big, params)
    assert out_big.shape == (300, action_size)
    assert jnp.allclose(out_big, ref_big, atol=5e-2, rtol=5e-2)

    print("KERNEL_OK")
</pallas_src>

<mosaic_0001>
module attributes {stable_mosaic.version = 11 : i64} {
  func.func @kernel(%arg0: i32, %arg1: memref<8x8xf32, #tpu.memory_space<vmem>>, %arg2: memref<8x256xbf16, #tpu.memory_space<vmem>>, %arg3: memref<4x256x128xbf16, #tpu.memory_space<vmem>>, %arg4: memref<5x1x256xf32, #tpu.memory_space<vmem>>, %arg5: memref<8x128xbf16, #tpu.memory_space<vmem>>) attributes {dimension_semantics = [#tpu.dimension_semantics<parallel>], iteration_bounds = array<i64: 1>, scalar_prefetch = 0 : i64, scratch_operands = 0 : i64, tpu.core_type = #tpu.core_type<tc>, window_params = [{transform_indices = @transform_0, window_bounds = array<i64: 8, 8>}, {pipeline_mode = #tpu.pipeline_mode<synchronous>, transform_indices = @transform_1, window_bounds = array<i64: 8, 256>}, {pipeline_mode = #tpu.pipeline_mode<synchronous>, transform_indices = @transform_2, window_bounds = array<i64: 4, 256, 128>}, {pipeline_mode = #tpu.pipeline_mode<synchronous>, transform_indices = @transform_3, window_bounds = array<i64: 5, 1, 256>}, {transform_indices = @transform_4, window_bounds = array<i64: 8, 128>}]} {
    %c0 = arith.constant 0 : index
    %c0_0 = arith.constant 0 : index
    %0 = vector.load %arg1[%c0, %c0_0] : memref<8x8xf32, #tpu.memory_space<vmem>>, vector<8x8xf32>
    %1 = arith.truncf %0 : vector<8x8xf32> to vector<8x8xbf16>
    %c0_1 = arith.constant 0 : index
    %c0_2 = arith.constant 0 : index
    %2 = vector.load %arg2[%c0_1, %c0_2] : memref<8x256xbf16, #tpu.memory_space<vmem>>, vector<8x256xbf16>
    %cst = arith.constant dense<0.000000e+00> : vector<8x256xf32>
    %3 = tpu.matmul %1, %2, %cst {dimension_numbers = #tpu.dot_dimension_numbers<[1], [0], [0], [1], [0, 0, 1, 1], [], []>} : vector<8x8xbf16>, vector<8x256xbf16>, vector<8x256xf32> -> vector<8x256xf32>
    %c0_3 = arith.constant 0 : index
    %c0_4 = arith.constant 0 : index
    %c0_5 = arith.constant 0 : index
    %4 = vector.load %arg4[%c0_3, %c0_4, %c0_5] : memref<5x1x256xf32, #tpu.memory_space<vmem>>, vector<1x1x256xf32>
    %5 = vector.shape_cast %4 : vector<1x1x256xf32> to vector<1x256xf32>
    %6 = vector.broadcast %5 : vector<1x256xf32> to vector<8x256xf32>
    %7 = arith.addf %3, %6 : vector<8x256xf32>
    %cst_6 = arith.constant 0.000000e+00 : f32
    %8 = vector.broadcast %cst_6 : f32 to vector<8x256xf32>
    %9 = arith.maximumf %7, %8 : vector<8x256xf32>
    %10 = arith.truncf %9 : vector<8x256xf32> to vector<8x256xbf16>
    %c0_7 = arith.constant 0 : index
    %c0_8 = arith.constant 0 : index
    %c0_9 = arith.constant 0 : index
    %11 = vector.load %arg3[%c0_7, %c0_8, %c0_9] : memref<4x256x128xbf16, #tpu.memory_space<vmem>>, vector<1x256x128xbf16>
    %12 = vector.shape_cast %11 : vector<1x256x128xbf16> to vector<256x128xbf16>
    %cst_10 = arith.constant dense<0.000000e+00> : vector<8x128xf32>
    %13 = tpu.matmul %10, %12, %cst_10 {dimension_numbers = #tpu.dot_dimension_numbers<[1], [0], [0], [1], [0, 0, 1, 1], [], []>} : vector<8x256xbf16>, vector<256x128xbf16>, vector<8x128xf32> -> vector<8x128xf32>
    %c1 = arith.constant 1 : index
    %c0_11 = arith.constant 0 : index
    %c0_12 = arith.constant 0 : index
    %14 = vector.load %arg4[%c1, %c0_11, %c0_12] : memref<5x1x256xf32, #tpu.memory_space<vmem>>, vector<1x1x128xf32>
    %15 = vector.shape_cast %14 : vector<1x1x128xf32> to vector<1x128xf32>
    %16 = vector.broadcast %15 : vector<1x128xf32> to vector<8x128xf32>
    %17 = arith.addf %13, %16 : vector<8x128xf32>
    %cst_13 = arith.constant 0.000000e+00 : f32
    %18 = vector.broadcast %cst_13 : f32 to vector<8x128xf32>
    %19 = arith.maximumf %17, %18 : vector<8x128xf32>
    %20 = arith.truncf %19 : vector<8x128xf32> to vector<8x128xbf16>
    %c1_14 = arith.constant 1 : index
    %c0_15 = arith.constant 0 : index
    %c0_16 = arith.constant 0 : index
    %21 = vector.load %arg3[%c1_14, %c0_15, %c0_16] : memref<4x256x128xbf16, #tpu.memory_space<vmem>>, vector<1x128x128xbf16>
    %22 = vector.shape_cast %21 : vector<1x128x128xbf16> to vector<128x128xbf16>
    %cst_17 = arith.constant dense<0.000000e+00> : vector<8x128xf32>
    %23 = tpu.matmul %20, %22, %cst_17 {dimension_numbers = #tpu.dot_dimension_numbers<[1], [0], [0], [1], [0, 0, 1, 1], [], []>} : vector<8x128xbf16>, vector<128x128xbf16>, vector<8x128xf32> -> vector<8x128xf32>
    %c2 = arith.constant 2 : index
    %c0_18 = arith.constant 0 : index
    %c0_19 = arith.constant 0 : index
    %24 = vector.load %arg4[%c2, %c0_18, %c0_19] : memref<5x1x256xf32, #tpu.memory_space<vmem>>, vector<1x1x128xf32>
    %25 = vector.shape_cast %24 : vector<1x1x128xf32> to vector<1x128xf32>
    %26 = vector.broadcast %25 : vector<1x128xf32> to vector<8x128xf32>
    %27 = arith.addf %23, %26 : vector<8x128xf32>
    %cst_20 = arith.constant 0.000000e+00 : f32
    %28 = vector.broadcast %cst_20 : f32 to vector<8x128xf32>
    %29 = arith.maximumf %27, %28 : vector<8x128xf32>
    %30 = arith.truncf %29 : vector<8x128xf32> to vector<8x128xbf16>
    %c2_21 = arith.constant 2 : index
    %c0_22 = arith.constant 0 : index
    %c0_23 = arith.constant 0 : index
    %31 = vector.load %arg3[%c2_21, %c0_22, %c0_23] : memref<4x256x128xbf16, #tpu.memory_space<vmem>>, vector<1x128x128xbf16>
    %32 = vector.shape_cast %31 : vector<1x128x128xbf16> to vector<128x128xbf16>
    %cst_24 = arith.constant dense<0.000000e+00> : vector<8x128xf32>
    %33 = tpu.matmul %30, %32, %cst_24 {dimension_numbers = #tpu.dot_dimension_numbers<[1], [0], [0], [1], [0, 0, 1, 1], [], []>} : vector<8x128xbf16>, vector<128x128xbf16>, vector<8x128xf32> -> vector<8x128xf32>
    %c3 = arith.constant 3 : index
    %c0_25 = arith.constant 0 : index
    %c0_26 = arith.constant 0 : index
    %34 = vector.load %arg4[%c3, %c0_25, %c0_26] : memref<5x1x256xf32, #tpu.memory_space<vmem>>, vector<1x1x128xf32>
    %35 = vector.shape_cast %34 : vector<1x1x128xf32> to vector<1x128xf32>
    %36 = vector.broadcast %35 : vector<1x128xf32> to vector<8x128xf32>
    %37 = arith.addf %33, %36 : vector<8x128xf32>
    %cst_27 = arith.constant 0.000000e+00 : f32
    %38 = vector.broadcast %cst_27 : f32 to vector<8x128xf32>
    %39 = arith.maximumf %37, %38 : vector<8x128xf32>
    %40 = arith.truncf %39 : vector<8x128xf32> to vector<8x128xbf16>
    %c3_28 = arith.constant 3 : index
    %c0_29 = arith.constant 0 : index
    %c0_30 = arith.constant 0 : index
    %41 = vector.load %arg3[%c3_28, %c0_29, %c0_30] : memref<4x256x128xbf16, #tpu.memory_space<vmem>>, vector<1x128x128xbf16>
    %42 = vector.shape_cast %41 : vector<1x128x128xbf16> to vector<128x128xbf16>
    %cst_31 = arith.constant dense<0.000000e+00> : vector<8x128xf32>
    %43 = tpu.matmul %40, %42, %cst_31 {dimension_numbers = #tpu.dot_dimension_numbers<[1], [0], [0], [1], [0, 0, 1, 1], [], []>} : vector<8x128xbf16>, vector<128x128xbf16>, vector<8x128xf32> -> vector<8x128xf32>
    %c4 = arith.constant 4 : index
    %c0_32 = arith.constant 0 : index
    %c0_33 = arith.constant 0 : index
    %44 = vector.load %arg4[%c4, %c0_32, %c0_33] : memref<5x1x256xf32, #tpu.memory_space<vmem>>, vector<1x1x128xf32>
    %45 = vector.shape_cast %44 : vector<1x1x128xf32> to vector<1x128xf32>
    %46 = vector.broadcast %45 : vector<1x128xf32> to vector<8x128xf32>
    %47 = arith.addf %43, %46 : vector<8x128xf32>
    %cst_34 = arith.constant 0.000000e+00 : f32
    %48 = vector.broadcast %cst_34 : f32 to vector<8x128xf32>
    %49 = arith.maximumf %47, %48 : vector<8x128xf32>
    %50 = arith.truncf %49 : vector<8x128xf32> to vector<8x128xbf16>
    %c0_35 = arith.constant 0 : index
    %c0_36 = arith.constant 0 : index
    %51 = vector.load %arg5[%c0_35, %c0_36] : memref<8x128xbf16, #tpu.memory_space<vmem>>, vector<8x128xbf16>
    tpu.vector_store %arg5[%c0_35, %c0_36], %50 {strides = array<i32>} : memref<8x128xbf16, #tpu.memory_space<vmem>>, vector<8x128xbf16>,
    return
  }
  func.func @transform_0(%arg0: i32) -> (i32, i32) {
    %c0_i32 = arith.constant 0 : i32
    %c0_i32_0 = arith.constant 0 : i32
    return %arg0, %c0_i32 : i32, i32
  }
  func.func @transform_1(%arg0: i32) -> (i32, i32) {
    %c0_i32 = arith.constant 0 : i32
    %c0_i32_0 = arith.constant 0 : i32
    %c0_i32_1 = arith.constant 0 : i32
    return %c0_i32, %c0_i32_0 : i32, i32
  }
  func.func @transform_2(%arg0: i32) -> (i32, i32, i32) {
    %c0_i32 = arith.constant 0 : i32
    %c0_i32_0 = arith.constant 0 : i32
    %c0_i32_1 = arith.constant 0 : i32
    %c0_i32_2 = arith.constant 0 : i32
    return %c0_i32, %c0_i32_0, %c0_i32_1 : i32, i32, i32
  }
  func.func @transform_3(%arg0: i32) -> (i32, i32, i32) {
    %c0_i32 = arith.constant 0 : i32
    %c0_i32_0 = arith.constant 0 : i32
    %c0_i32_1 = arith.constant 0 : i32
    %c0_i32_2 = arith.constant 0 : i32
    return %c0_i32, %c0_i32_0, %c0_i32_1 : i32, i32, i32
  }
  func.func @transform_4(%arg0: i32) -> (i32, i32) {
    %c0_i32 = arith.constant 0 : i32
    %c0_i32_0 = arith.constant 0 : i32
    return %arg0, %c0_i32 : i32, i32
  }
}

</mosaic_0001>

<llo_original>
// kernel: tpu_custom_call.1
$region0: #{tpu_custom_call.1}
  #allocation0 [shape = 'u32[]', space=smem, size = 0x4, offset = 0x4, fixed_abs, tag = 'smem constant byte address 0x4 - core index']
  #allocation1 [shape = 'u32[72,128]{1,0:T(1,128)}', space=vmem, size = 0x9000, scoped, tag = 'internal scratch']
  %s0 = inlined_call_operand.hbm [shape: f32[8,8], index: 0, kind: input, shape index: {}]
  %s1 = inlined_call_operand.hbm [shape: bf16[8,256], index: 1, kind: input, shape index: {}]
  %s2 = inlined_call_operand.hbm [shape: bf16[4,256,128], index: 2, kind: input, shape index: {}]
  %s3 = inlined_call_operand.hbm [shape: f32[5,1,256], index: 3, kind: input, shape index: {}]
  %s4 = inlined_call_operand.hbm [shape: bf16[8,128], index: 4, kind: output, shape index: {}]
  %s5 = sld [smem:[#allocation0]]
  $region42: #{tpu_custom_call.1} parent=0
    _
  %s7 = ssub.s32 1, %s5
  %s8 = scalar_select 0, %s7, %s5
  $region1: #{tpu_custom_call.1} parent=0
    #allocation2 [shape = 'u8[4096]{0}', space=vmem, size = 0x1000, scoped, tag = 'input window, operand 0, single buffered']
    #allocation3 [shape = 's32[1]{0}', space=sflag, size = 0x4, scoped, tag = 'scoped memory for tpu_custom_call.1']
    #allocation4 [shape = 's32[1]{0}', space=sflag, size = 0x4, scoped, tag = 'scoped memory for tpu_custom_call.1']
    #allocation5 [shape = 'u8[4096]{0}', space=vmem, size = 0x1000, scoped, tag = 'input window, operand 1, single buffered']
    #allocation6 [shape = 's32[1]{0}', space=sflag, size = 0x4, scoped, tag = 'scoped memory for tpu_custom_call.1']
    #allocation7 [shape = 'u8[262144]{0}', space=vmem, size = 0x40000, scoped, tag = 'input window, operand 2, single buffered']
    #allocation8 [shape = 'u8[5120]{0}', space=vmem, size = 0x1400, scoped, tag = 'input window, operand 3, single buffered']
    #allocation9 [shape = 's32[1]{0}', space=sflag, size = 0x4, scoped, tag = 'scoped memory for tpu_custom_call.1']
    #allocation10 [shape = 'u8[2048]{0}', space=vmem, size = 0x800, scoped, tag = 'output window, operand 0, single buffered']
    %9 = vsyncpa [#allocation3], 0
    %10 = vsyncpa [#allocation6], 0
    %11 = vsyncpa [#allocation9], 0
    %12 = vsyncpa [#allocation4], 0
    // Predicated region
    $region2: #{tpu_custom_call.1} parent=1 // pred_check
      _
    $region3: #{tpu_custom_call.1} parent=1 // pred_check_branch
      %14 = sbr.rel (0) target = $region5
    $region4: #{tpu_custom_call.1} parent=1 // pred_region
      %16 = vsyncadd [#allocation3], 0
      %s18 = sshll.u32 %s0, 4
      %s19 = int_to_ptr.hbm [resolvable:$true] %s18
      %s20 = sshll.u32 [#allocation2], 4
      %s21 = int_to_ptr.vmem [resolvable:$true] %s20
      %23 = dma.hbm_to_vmem [thread:$0]  %s19, 128, %s21, [#allocation3]
    $region5: #{tpu_custom_call.1} parent=1 // pred_fallthru
      _
    // Predicated region
    $region6: #{tpu_custom_call.1} parent=1 // pred_check
      _
    $region7: #{tpu_custom_call.1} parent=1 // pred_check_branch
      %25 = sbr.rel (0) target = $region9
    $region8: #{tpu_custom_call.1} parent=1 // pred_region
      %27 = vsyncadd [#allocation6], 0
      %s29 = sshll.u32 %s1, 4
      %s30 = int_to_ptr.hbm [resolvable:$true] %s29
      %s31 = sshll.u32 [#allocation5], 4
      %s32 = int_to_ptr.vmem [resolvable:$true] %s31
      %34 = dma.hbm_to_vmem [thread:$0]  %s30, 128, %s32, [#allocation6]
    $region9: #{tpu_custom_call.1} parent=1 // pred_fallthru
      _
    // Predicated region
    $region10: #{tpu_custom_call.1} parent=1 // pred_check
      _
    $region11: #{tpu_custom_call.1} parent=1 // pred_check_branch
      %36 = sbr.rel (0) target = $region13
    $region12: #{tpu_custom_call.1} parent=1 // pred_region
      %38 = vsyncadd [#allocation6], 0
      %s39 = sshll.u32 %s2, 4
      %s40 = int_to_ptr.hbm [resolvable:$true] %s39
      %s41 = sshll.u32 [#allocation7], 4
      %s42 = int_to_ptr.vmem [resolvable:$true] %s41
      %47 = dma.hbm_to_vmem [thread:$0]  %s40, 8192, %s42, [#allocation6], 64, 64, 4
    $region13: #{tpu_custom_call.1} parent=1 // pred_fallthru
      _
    // Predicated region
    $region14: #{tpu_custom_call.1} parent=1 // pred_check
      _
    $region15: #{tpu_custom_call.1} parent=1 // pred_check_branch
      %49 = sbr.rel (0) target = $region17
    $region16: #{tpu_custom_call.1} parent=1 // pred_region
      %51 = vsyncadd [#allocation9], 0
      %s52 = sshll.u32 %s3, 4
      %s53 = int_to_ptr.hbm [resolvable:$true] %s52
      %s54 = sshll.u32 [#allocation8], 4
      %s55 = int_to_ptr.vmem [resolvable:$true] %s54
      %60 = dma.hbm_to_vmem [thread:$0]  %s53, 160, %s55, [#allocation9], 32, 32, 2
    $region17: #{tpu_custom_call.1} parent=1 // pred_fallthru
      _
    // Predicated region
    $region18: #{tpu_custom_call.1} parent=1 // pred_check
      _
    $region19: #{tpu_custom_call.1} parent=1 // pred_check_branch
      %62 = sbr.rel (0) target = $region21
    $region20: #{tpu_custom_call.1} parent=1 // pred_region
      %64 = dma.done [#allocation3], 128
    $region21: #{tpu_custom_call.1} parent=1 // pred_fallthru
      _
    // Predicated region
    $region22: #{tpu_custom_call.1} parent=1 // pred_check
      _
    $region23: #{tpu_custom_call.1} parent=1 // pred_check_branch
      %66 = sbr.rel (0) target = $region25
    $region24: #{tpu_custom_call.1} parent=1 // pred_region
      %68 = dma.done [#allocation6], 128
    $region25: #{tpu_custom_call.1} parent=1 // pred_fallthru
      _
    // Predicated region
    $region26: #{tpu_custom_call.1} parent=1 // pred_check
      _
    $region27: #{tpu_custom_call.1} parent=1 // pred_check_branch
      %70 = sbr.rel (0) target = $region29
    $region28: #{tpu_custom_call.1} parent=1 // pred_region
      %72 = dma.done [#allocation6], 8192
    $region29: #{tpu_custom_call.1} parent=1 // pred_fallthru
      _
    // Predicated region
    $region30: #{tpu_custom_call.1} parent=1 // pred_check
      _
    $region31: #{tpu_custom_call.1} parent=1 // pred_check_branch
      %74 = sbr.rel (0) target = $region33
    $region32: #{tpu_custom_call.1} parent=1 // pred_region
      %76 = dma.done [#allocation9], 160
    $region33: #{tpu_custom_call.1} parent=1 // pred_fallthru
      _
    %v78 = vld [vmem:[#allocation2] sm:$0xff]
    %v79 = vpack.c.bf16 %v78, %v78
    %v80 = vld [vmem:[#allocation5] sm:$0xff]
    %v81 = vld [vmem:[#allocation8] sm:$0x3]
    %v83 = vperm.slane %v81, 0
    %v84 = vperm.slane %v81, 1
    %v88 = vunpack.c.l.b16 %v80
    %v89 = vunpack.c.h.b16 %v80
    %v90 = vpack.c.b16 %v88, %v88
    %v91 = vpack.c.b16 %v89, %v89
    %vm92 = vcmask 64512
    %v94 = vsel %vm92, %v79, 0
    %vm96 = vcmask 1043456
    %v98 = vsel %vm96, %v90, 0
    %v101 = vsel %vm96, %v91, 0
    %103 = vmatpush.bf16.msra.mxu0 0
    %104 = vmatpush.bf16.msra.mxu0 0
    %105 = vmatpush.bf16.msra.mxu0 0
    %106 = vmatpush.bf16.msra.mxu0 0
    %107 = vmatpush.bf16.msra.mxu0 0
    %108 = vmatpush.bf16.msra.mxu0 0
    %109 = vmatpush.bf16.msra.mxu0 0
    %110 = vmatpush.bf16.msra.mxu0 %v98
    %111 = vmatmul.bf16.gmra.mxu0 %v94
    %v112 = vpop.f32.mrf.mxu0
    %v113 = vadd.f32 %v83, %v112
    %v114 = vpop.f32.mrf.mxu0
    %115 = vdwg.mxu0
    %116 = vmatpush.bf16.msra.mxu0 0
    %117 = vmatpush.bf16.msra.mxu0 0
    %118 = vmatpush.bf16.msra.mxu0 0
    %119 = vmatpush.bf16.msra.mxu0 0
    %120 = vmatpush.bf16.msra.mxu0 0
    %121 = vmatpush.bf16.msra.mxu0 0
    %122 = vmatpush.bf16.msra.mxu0 0
    %123 = vmatpush.bf16.msra.mxu0 %v101
    %124 = vmatmul.bf16.gmra.mxu0 %v94
    %v125 = vpop.f32.mrf.mxu0
    %v126 = vadd.f32 %v84, %v125
    %v127 = vpop.f32.mrf.mxu0
    %128 = vdwg.mxu0
    %v129 = vmax.f32 %v113, 0.0
    %v130 = vmax.f32 %v126, 0.0
    %v131 = vpack.c.bf16 %v129, %v129
    %v132 = vpack.c.bf16 %v130, %v130
    %v133 = vld [vmem:[#allocation7] sm:$0xf]
    %v134 = vld [vmem:[#allocation7 + $0x4] sm:$0xf]
    %v135 = vld [vmem:[#allocation7 + $0x8] sm:$0xf]
    %v136 = vld [vmem:[#allocation7 + $0xc] sm:$0xf]
    %v137 = vld [vmem:[#allocation7 + $0x10] sm:$0xf]
    %v138 = vld [vmem:[#allocation7 + $0x14] sm:$0xf]
    %v139 = vld [vmem:[#allocation7 + $0x18] sm:$0xf]
    %v140 = vld [vmem:[#allocation7 + $0x1c] sm:$0xf]
    %v141 = vld [vmem:[#allocation7 + $0x20] sm:$0xf]
    %v142 = vld [vmem:[#allocation7 + $0x24] sm:$0xf]
    %v143 = vld [vmem:[#allocation7 + $0x28] sm:$0xf]
    %v144 = vld [vmem:[#allocation7 + $0x2c] sm:$0xf]
    %v145 = vld [vmem:[#allocation7 + $0x30] sm:$0xf]
    %v146 = vld [vmem:[#allocation7 + $0x34] sm:$0xf]
    %v147 = vld [vmem:[#allocation7 + $0x38] sm:$0xf]
    %v148 = vld [vmem:[#allocation7 + $0x3c] sm:$0xf]
    %v149 = vld [vmem:[#allocation7 + $0x40] sm:$0xf]
    %v150 = vld [vmem:[#allocation7 + $0x44] sm:$0xf]
    %v151 = vld [vmem:[#allocation7 + $0x48] sm:$0xf]
    %v152 = vld [vmem:[#allocation7 + $0x4c] sm:$0xf]
    %v153 = vld [vmem:[#allocation7 + $0x50] sm:$0xf]
    %v154 = vld [vmem:[#allocation7 + $0x54] sm:$0xf]
    %v155 = vld [vmem:[#allocation7 + $0x58] sm:$0xf]
    %v156 = vld [vmem:[#allocation7 + $0x5c] sm:$0xf]
    %v157 = vld [vmem:[#allocation7 + $0x60] sm:$0xf]
    %v158 = vld [vmem:[#allocation7 + $0x64] sm:$0xf]
    %v159 = vld [vmem:[#allocation7 + $0x68] sm:$0xf]
    %v160 = vld [vmem:[#allocation7 + $0x6c] sm:$0xf]
    %v161 = vld [vmem:[#allocation7 + $0x70] sm:$0xf]
    %v162 = vld [vmem:[#allocation7 + $0x74] sm:$0xf]
    %v163 = vld [vmem:[#allocation7 + $0x78] sm:$0xf]
    %v164 = vld [vmem:[#allocation7 + $0x7c] sm:$0xf]
    %s165 = scalar_lea.vmem [#allocation8], 2
    %v166 = vld [vmem:[%s165] sm:$0x1]
    %v168 = vperm.slane %v166, 0
    %v202 = vunpack.c.l.b16 %v133
    %v203 = vunpack.c.l.b16 %v134
    %v204 = vunpack.c.l.b16 %v135
    %v205 = vunpack.c.l.b16 %v136
    %v206 = vunpack.c.l.b16 %v137
    %v207 = vunpack.c.l.b16 %v138
    %v208 = vunpack.c.l.b16 %v139
    %v209 = vunpack.c.l.b16 %v140
    %v210 = vunpack.c.l.b16 %v141
    %v211 = vunpack.c.l.b16 %v142
    %v212 = vunpack.c.l.b16 %v143
    %v213 = vunpack.c.l.b16 %v144
    %v214 = vunpack.c.l.b16 %v145
    %v215 = vunpack.c.l.b16 %v146
    %v216 = vunpack.c.l.b16 %v147
    %v217 = vunpack.c.l.b16 %v148
    %v218 = vunpack.c.l.b16 %v149
    %v219 = vunpack.c.l.b16 %v150
    %v220 = vunpack.c.l.b16 %v151
    %v221 = vunpack.c.l.b16 %v152
    %v222 = vunpack.c.l.b16 %v153
    %v223 = vunpack.c.l.b16 %v154
    %v224 = vunpack.c.l.b16 %v155
    %v225 = vunpack.c.l.b16 %v156
    %v226 = vunpack.c.l.b16 %v157
    %v227 = vunpack.c.l.b16 %v158
    %v228 = vunpack.c.l.b16 %v159
    %v229 = vunpack.c.l.b16 %v160
    %v230 = vunpack.c.l.b16 %v161
    %v231 = vunpack.c.l.b16 %v162
    %v232 = vunpack.c.l.b16 %v163
    %v233 = vunpack.c.l.b16 %v164
    %v234 = vpack.c.b16 %v203, %v202
    %v235 = vpack.c.b16 %v205, %v204
    %v236 = vpack.c.b16 %v207, %v206
    %v237 = vpack.c.b16 %v209, %v208
    %v238 = vpack.c.b16 %v211, %v210
    %v239 = vpack.c.b16 %v213, %v212
    %v240 = vpack.c.b16 %v215, %v214
    %v241 = vpack.c.b16 %v217, %v216
    %v242 = vpack.c.b16 %v219, %v218
    %v243 = vpack.c.b16 %v221, %v220
    %v244 = vpack.c.b16 %v223, %v222
    %v245 = vpack.c.b16 %v225, %v224
    %v246 = vpack.c.b16 %v227, %v226
    %v247 = vpack.c.b16 %v229, %v228
    %v248 = vpack.c.b16 %v231, %v230
    %v249 = vpack.c.b16 %v233, %v232
    %266 = vmatpush.bf16.msra.mxu0 %v241
    %267 = vmatpush.bf16.msra.mxu0 %v240
    %268 = vmatpush.bf16.msra.mxu0 %v239
    %269 = vmatpush.bf16.msra.mxu0 %v238
    %270 = vmatpush.bf16.msra.mxu0 %v237
    %271 = vmatpush.bf16.msra.mxu0 %v236
    %272 = vmatpush.bf16.msra.mxu0 %v235
    %273 = vmatpush.bf16.msra.mxu0 %v234
    %274 = vmatmul.bf16.gmra.mxu0 %v131
    %v275 = vpop.f32.mrf.mxu0
    %v276 = vadd.f32 %v168, %v275
    %v277 = vpop.f32.mrf.mxu0
    %278 = vdwg.mxu0
    %279 = vmatpush.bf16.msra.mxu0 %v249
    %280 = vmatpush.bf16.msra.mxu0 %v248
    %281 = vmatpush.bf16.msra.mxu0 %v247
    %282 = vmatpush.bf16.msra.mxu0 %v246
    %283 = vmatpush.bf16.msra.mxu0 %v245
    %284 = vmatpush.bf16.msra.mxu0 %v244
    %285 = vmatpush.bf16.msra.mxu0 %v243
    %286 = vmatpush.bf16.msra.mxu0 %v242
    %287 = vmatmul.bf16.gmra.mxu0 %v132
    %v288 = vpop.f32.mrf.mxu0
    %v289 = vadd.f32 %v276, %v288
    %v290 = vpop.f32.mrf.mxu0
    %291 = vdwg.mxu0
    %v292 = vmax.f32 %v289, 0.0
    %v293 = vpack.c.bf16 %v292, %v292
    %s294 = scalar_lea.vmem [#allocation7], 128
    %v295 = vld [vmem:[%s294] sm:$0xf]
    %v296 = vld [vmem:[%s294 + $0x4] sm:$0xf]
    %v297 = vld [vmem:[%s294 + $0x8] sm:$0xf]
    %v298 = vld [vmem:[%s294 + $0xc] sm:$0xf]
    %v299 = vld [vmem:[%s294 + $0x10] sm:$0xf]
    %v300 = vld [vmem:[%s294 + $0x14] sm:$0xf]
    %v301 = vld [vmem:[%s294 + $0x18] sm:$0xf]
    %v302 = vld [vmem:[%s294 + $0x1c] sm:$0xf]
    %v303 = vld [vmem:[%s294 + $0x20] sm:$0xf]
    %v304 = vld [vmem:[%s294 + $0x24] sm:$0xf]
    %v305 = vld [vmem:[%s294 + $0x28] sm:$0xf]
    %v306 = vld [vmem:[%s294 + $0x2c] sm:$0xf]
    %v307 = vld [vmem:[%s294 + $0x30] sm:$0xf]
    %v308 = vld [vmem:[%s294 + $0x34] sm:$0xf]
    %v309 = vld [vmem:[%s294 + $0x38] sm:$0xf]
    %v310 = vld [vmem:[%s294 + $0x3c] sm:$0xf]
    %s311 = scalar_lea.vmem [#allocation8], 4
    %v312 = vld [vmem:[%s311] sm:$0x1]
    %v314 = vperm.slane %v312, 0
    %v332 = vunpack.c.l.b16 %v295
    %v333 = vunpack.c.l.b16 %v296
    %v334 = vunpack.c.l.b16 %v297
    %v335 = vunpack.c.l.b16 %v298
    %v336 = vunpack.c.l.b16 %v299
    %v337 = vunpack.c.l.b16 %v300
    %v338 = vunpack.c.l.b16 %v301
    %v339 = vunpack.c.l.b16 %v302
    %v340 = vunpack.c.l.b16 %v303
    %v341 = vunpack.c.l.b16 %v304
    %v342 = vunpack.c.l.b16 %v305
    %v343 = vunpack.c.l.b16 %v306
    %v344 = vunpack.c.l.b16 %v307
    %v345 = vunpack.c.l.b16 %v308
    %v346 = vunpack.c.l.b16 %v309
    %v347 = vunpack.c.l.b16 %v310
    %v348 = vpack.c.b16 %v333, %v332
    %v349 = vpack.c.b16 %v335, %v334
    %v350 = vpack.c.b16 %v337, %v336
    %v351 = vpack.c.b16 %v339, %v338
    %v352 = vpack.c.b16 %v341, %v340
    %v353 = vpack.c.b16 %v343, %v342
    %v354 = vpack.c.b16 %v345, %v344
    %v355 = vpack.c.b16 %v347, %v346
    %364 = vmatpush.bf16.msra.mxu0 %v355
    %365 = vmatpush.bf16.msra.mxu0 %v354
    %366 = vmatpush.bf16.msra.mxu0 %v353
    %367 = vmatpush.bf16.msra.mxu0 %v352
    %368 = vmatpush.bf16.msra.mxu0 %v351
    %369 = vmatpush.bf16.msra.mxu0 %v350
    %370 = vmatpush.bf16.msra.mxu0 %v349
    %371 = vmatpush.bf16.msra.mxu0 %v348
    %372 = vmatmul.bf16.gmra.mxu0 %v293
    %v373 = vpop.f32.mrf.mxu0
    %v374 = vadd.f32 %v314, %v373
    %v375 = vpop.f32.mrf.mxu0
    %376 = vdwg.mxu0
    %v377 = vmax.f32 %v374, 0.0
    %v378 = vpack.c.bf16 %v377, %v377
    %s379 = scalar_lea.vmem [#allocation7], 256
    %v380 = vld [vmem:[%s379] sm:$0xf]
    %v381 = vld [vmem:[%s379 + $0x4] sm:$0xf]
    %v382 = vld [vmem:[%s379 + $0x8] sm:$0xf]
    %v383 = vld [vmem:[%s379 + $0xc] sm:$0xf]
    %v384 = vld [vmem:[%s379 + $0x10] sm:$0xf]
    %v385 = vld [vmem:[%s379 + $0x14] sm:$0xf]
    %v386 = vld [vmem:[%s379 + $0x18] sm:$0xf]
    %v387 = vld [vmem:[%s379 + $0x1c] sm:$0xf]
    %v388 = vld [vmem:[%s379 + $0x20] sm:$0xf]
    %v389 = vld [vmem:[%s379 + $0x24] sm:$0xf]
    %v390 = vld [vmem:[%s379 + $0x28] sm:$0xf]
    %v391 = vld [vmem:[%s379 + $0x2c] sm:$0xf]
    %v392 = vld [vmem:[%s379 + $0x30] sm:$0xf]
    %v393 = vld [vmem:[%s379 + $0x34] sm:$0xf]
    %v394 = vld [vmem:[%s379 + $0x38] sm:$0xf]
    %v395 = vld [vmem:[%s379 + $0x3c] sm:$0xf]
    %s396 = scalar_lea.vmem [#allocation8], 6
    %v397 = vld [vmem:[%s396] sm:$0x1]
    %v399 = vperm.slane %v397, 0
    %v417 = vunpack.c.l.b16 %v380
    %v418 = vunpack.c.l.b16 %v381
    %v419 = vunpack.c.l.b16 %v382
    %v420 = vunpack.c.l.b16 %v383
    %v421 = vunpack.c.l.b16 %v384
    %v422 = vunpack.c.l.b16 %v385
    %v423 = vunpack.c.l.b16 %v386
    %v424 = vunpack.c.l.b16 %v387
    %v425 = vunpack.c.l.b16 %v388
    %v426 = vunpack.c.l.b16 %v389
    %v427 = vunpack.c.l.b16 %v390
    %v428 = vunpack.c.l.b16 %v391
    %v429 = vunpack.c.l.b16 %v392
    %v430 = vunpack.c.l.b16 %v393
    %v431 = vunpack.c.l.b16 %v394
    %v432 = vunpack.c.l.b16 %v395
    %v433 = vpack.c.b16 %v418, %v417
    %v434 = vpack.c.b16 %v420, %v419
    %v435 = vpack.c.b16 %v422, %v421
    %v436 = vpack.c.b16 %v424, %v423
    %v437 = vpack.c.b16 %v426, %v425
    %v438 = vpack.c.b16 %v428, %v427
    %v439 = vpack.c.b16 %v430, %v429
    %v440 = vpack.c.b16 %v432, %v431
    %449 = vmatpush.bf16.msra.mxu0 %v440
    %450 = vmatpush.bf16.msra.mxu0 %v439
    %451 = vmatpush.bf16.msra.mxu0 %v438
    %452 = vmatpush.bf16.msra.mxu0 %v437
    %453 = vmatpush.bf16.msra.mxu0 %v436
    %454 = vmatpush.bf16.msra.mxu0 %v435
    %455 = vmatpush.bf16.msra.mxu0 %v434
    %456 = vmatpush.bf16.msra.mxu0 %v433
    %457 = vmatmul.bf16.gmra.mxu0 %v378
    %v458 = vpop.f32.mrf.mxu0
    %v459 = vadd.f32 %v399, %v458
    %v460 = vpop.f32.mrf.mxu0
    %461 = vdwg.mxu0
    %v462 = vmax.f32 %v459, 0.0
    %v463 = vpack.c.bf16 %v462, %v462
    %s464 = scalar_lea.vmem [#allocation7], 384
    %v465 = vld [vmem:[%s464] sm:$0xf]
    %v466 = vld [vmem:[%s464 + $0x4] sm:$0xf]
    %v467 = vld [vmem:[%s464 + $0x8] sm:$0xf]
    %v468 = vld [vmem:[%s464 + $0xc] sm:$0xf]
    %v469 = vld [vmem:[%s464 + $0x10] sm:$0xf]
    %v470 = vld [vmem:[%s464 + $0x14] sm:$0xf]
    %v471 = vld [vmem:[%s464 + $0x18] sm:$0xf]
    %v472 = vld [vmem:[%s464 + $0x1c] sm:$0xf]
    %v473 = vld [vmem:[%s464 + $0x20] sm:$0xf]
    %v474 = vld [vmem:[%s464 + $0x24] sm:$0xf]
    %v475 = vld [vmem:[%s464 + $0x28] sm:$0xf]
    %v476 = vld [vmem:[%s464 + $0x2c] sm:$0xf]
    %v477 = vld [vmem:[%s464 + $0x30] sm:$0xf]
    %v478 = vld [vmem:[%s464 + $0x34] sm:$0xf]
    %v479 = vld [vmem:[%s464 + $0x38] sm:$0xf]
    %v480 = vld [vmem:[%s464 + $0x3c] sm:$0xf]
    %s481 = scalar_lea.vmem [#allocation8], 8
    %v482 = vld [vmem:[%s481] sm:$0x1]
    %v484 = vperm.slane %v482, 0
    %v502 = vunpack.c.l.b16 %v465
    %v503 = vunpack.c.l.b16 %v466
    %v504 = vunpack.c.l.b16 %v467
    %v505 = vunpack.c.l.b16 %v468
    %v506 = vunpack.c.l.b16 %v469
    %v507 = vunpack.c.l.b16 %v470
    %v508 = vunpack.c.l.b16 %v471
    %v509 = vunpack.c.l.b16 %v472
    %v510 = vunpack.c.l.b16 %v473
    %v511 = vunpack.c.l.b16 %v474
    %v512 = vunpack.c.l.b16 %v475
    %v513 = vunpack.c.l.b16 %v476
    %v514 = vunpack.c.l.b16 %v477
    %v515 = vunpack.c.l.b16 %v478
    %v516 = vunpack.c.l.b16 %v479
    %v517 = vunpack.c.l.b16 %v480
    %v518 = vpack.c.b16 %v503, %v502
    %v519 = vpack.c.b16 %v505, %v504
    %v520 = vpack.c.b16 %v507, %v506
    %v521 = vpack.c.b16 %v509, %v508
    %v522 = vpack.c.b16 %v511, %v510
    %v523 = vpack.c.b16 %v513, %v512
    %v524 = vpack.c.b16 %v515, %v514
    %v525 = vpack.c.b16 %v517, %v516
    %534 = vmatpush.bf16.msra.mxu0 %v525
    %535 = vmatpush.bf16.msra.mxu0 %v524
    %536 = vmatpush.bf16.msra.mxu0 %v523
    %537 = vmatpush.bf16.msra.mxu0 %v522
    %538 = vmatpush.bf16.msra.mxu0 %v521
    %539 = vmatpush.bf16.msra.mxu0 %v520
    %540 = vmatpush.bf16.msra.mxu0 %v519
    %541 = vmatpush.bf16.msra.mxu0 %v518
    %542 = vmatmul.bf16.gmra.mxu0 %v463
    %v543 = vpop.f32.mrf.mxu0
    %v544 = vadd.f32 %v484, %v543
    %v545 = vpop.f32.mrf.mxu0
    %546 = vdwg.mxu0
    %v547 = vmax.f32 %v544, 0.0
    %v548 = vpack.c.bf16 %v547, %v547
    %549 = vst [vmem:[#allocation10] sm:$0xf] %v548
    // Predicated region
    $region34: #{tpu_custom_call.1} parent=1 // pred_check
      _
    $region35: #{tpu_custom_call.1} parent=1 // pred_check_branch
      %551 = sbr.rel (0) target = $region37
    $region36: #{tpu_custom_call.1} parent=1 // pred_region
      %553 = vsyncadd [#allocation4], 0
      %s555 = sshll.u32 [#allocation10], 4
      %s556 = int_to_ptr.vmem [resolvable:$true] %s555
      %s557 = sshll.u32 %s4, 4
      %s558 = int_to_ptr.hbm [resolvable:$true] %s557
      %560 = dma.vmem_to_hbm [thread:$0]  %s556, 64, %s558, [#allocation4]
    $region37: #{tpu_custom_call.1} parent=1 // pred_fallthru
      _
    // Predicated region
    $region38: #{tpu_custom_call.1} parent=1 // pred_check
      _
    $region39: #{tpu_custom_call.1} parent=1 // pred_check_branch
      %562 = sbr.rel (0) target = $region41
    $region40: #{tpu_custom_call.1} parent=1 // pred_region
      %564 = dma.done [#allocation4], 64
    $region41: #{tpu_custom_call.1} parent=1 // pred_fallthru
      _
    %565 = vsyncpa [#allocation3], 1
    %566 = vsyncpa [#allocation6], 1
    %567 = vsyncpa [#allocation9], 1
    %568 = vsyncpa [#allocation4], 1

</llo_original>
